<compile_context>
chip_gen: v7x
topology: tpu7x:2x2x1
jax: 0.10.0
libtpu: 0.0.40
codegen_flags: <defaults>
</compile_context>

<pallas_src>
import functools

import jax
import jax.numpy as jnp
from jax.experimental import pallas as pl
from jax.experimental.pallas import tpu as pltpu

PROTOTYPE_SIZE = 10


def _round_up(x, m):
    return ((x + m - 1) // m) * m


def _autoencoder_kernel(x_ref,
                        ew1_ref, eb1_ref, ew2_ref, eb2_ref, ew3_ref, eb3_ref,
                        dw1_ref, db1_ref, dw2_ref, db2_ref, dw3_ref, db3_ref,
                        z_ref, r_ref):
    """One batch tile. Activations are (features, TB); weights are torch-native (out, in)."""

    def layer(h, w_ref, b_ref, relu):
        # (out, in) @ (in, TB) + (out, 1)  -> (out, TB); f32 accumulation on the MXU.
        y = jnp.dot(w_ref[...], h, preferred_element_type=jnp.float32) + b_ref[...]
        return jnp.maximum(y, 0.0) if relu else y

    x = x_ref[...].astype(jnp.float32)            # (obs, TB)

    # ----- encoder -----
    h = layer(x, ew1_ref, eb1_ref, True)
    h = layer(h, ew2_ref, eb2_ref, True)
    z = layer(h, ew3_ref, eb3_ref, True)          # transform_input (P, TB)

    # ----- decoder -----
    d = layer(z, dw1_ref, db1_ref, True)
    d = layer(d, dw2_ref, db2_ref, True)
    r = layer(d, dw3_ref, db3_ref, False)         # recon_input (obs, TB), no final ReLU

    z_ref[...] = z.astype(z_ref.dtype)
    r_ref[...] = r.astype(r_ref.dtype)


@functools.partial(jax.jit, static_argnames=("block_batch",))
def autoencoder_forward(x, params, *, block_batch=512):
    """params: torch-native layouts — weights (out, in), biases (out, 1).
    Returns (transform_input, recon_input) in the usual (batch, features) layout."""
    B, obs = x.shape
    P = PROTOTYPE_SIZE

    # Batch tile: lane (last) dim must be a multiple of 128; cap so it stays VMEM-safe
    # on v7x (64 MiB physical) while still feeding >=256 rows to the MXU when B is big.
    tb = min(block_batch, _round_up(max(B, 1), 128))
    n_tiles = pl.cdiv(B, tb)
    b_pad = n_tiles * tb

    # Transpose to (features, batch) and zero-pad the batch (lane) axis.
    x_t = jnp.pad(jnp.transpose(x).astype(jnp.float32), ((0, 0), (0, b_pad - B)))

    w_names = ("ew1", "eb1", "ew2", "eb2", "ew3", "eb3",
               "dw1", "db1", "dw2", "db2", "dw3", "db3")
    w_args = tuple(params[n] for n in w_names)

    # Weights / biases: full-array blocks with a constant index map -> DMA'd once,
    # VMEM-resident across every grid step.
    w_specs = [pl.BlockSpec(a.shape, lambda i: (0, 0)) for a in w_args]

    flops = 2 * b_pad * (obs * P + 4 * P * P + P * obs)
    bytes_accessed = 4 * (b_pad * (obs + P + obs) + sum(int(a.size) for a in w_args))

    z_t, r_t = pl.pallas_call(
        _autoencoder_kernel,
        grid=(n_tiles,),
        in_specs=[pl.BlockSpec((obs, tb), lambda i: (0, i))] + w_specs,
        out_specs=(pl.BlockSpec((P, tb), lambda i: (0, i)),
                   pl.BlockSpec((obs, tb), lambda i: (0, i))),
        out_shape=(jax.ShapeDtypeStruct((P, b_pad), jnp.float32),
                   jax.ShapeDtypeStruct((obs, b_pad), jnp.float32)),
        compiler_params=pltpu.CompilerParams(
            dimension_semantics=("parallel",)),           # v7x: shard batch tiles over 2 TCs
        cost_estimate=pl.CostEstimate(
            flops=flops, transcendentals=0, bytes_accessed=bytes_accessed),
    )(x_t, *w_args)

    # Back to PyTorch's (batch, features) layout; drop the batch padding (layout plumbing only).
    z = jnp.transpose(z_t[:, :B])
    r = jnp.transpose(r_t[:, :B])
    return z, r


def init_params(key, observation_size):
    """Deterministic synthetic init matching nn.Linear shapes: W (out, in), b (out, 1)."""
    P = PROTOTYPE_SIZE
    dims = [
        ("ew1", "eb1", observation_size, P),
        ("ew2", "eb2", P, P),
        ("ew3", "eb3", P, P),
        ("dw1", "db1", P, P),
        ("dw2", "db2", P, P),
        ("dw3", "db3", P, observation_size),
    ]
    params = {}
    for wname, bname, fan_in, fan_out in dims:
        key, kw, kb = jax.random.split(key, 3)
        bound = 1.0 / (fan_in ** 0.5)
        params[wname] = jax.random.uniform(
            kw, (fan_out, fan_in), jnp.float32, -bound, bound)
        params[bname] = jax.random.uniform(
            kb, (fan_out, 1), jnp.float32, -bound, bound)
    return params


def _reference_forward(x, params):
    """Pure-JAX reference (standard (batch, features) layout) for a correctness check."""
    def lin(h, w, b):
        return h @ w.T + b.reshape(1, -1)

    h = jax.nn.relu(lin(x, params["ew1"], params["eb1"]))
    h = jax.nn.relu(lin(h, params["ew2"], params["eb2"]))
    z = jax.nn.relu(lin(h, params["ew3"], params["eb3"]))
    d = jax.nn.relu(lin(z, params["dw1"], params["db1"]))
    d = jax.nn.relu(lin(d, params["dw2"], params["db2"]))
    r = lin(d, params["dw3"], params["db3"])
    return z, r


if __name__ == "__main__":
    key = jax.random.PRNGKey(0)
    observation_size = 4      # CartPole observation size
    batch = 8

    key, kx = jax.random.split(key)
    x = jax.random.normal(kx, (batch, observation_size), jnp.float32)
    params = init_params(key, observation_size)

    z, recon = autoencoder_forward(x, params)
    jax.block_until_ready((z, recon))

    z_ref, r_ref = _reference_forward(x, params)
    assert z.shape == (batch, PROTOTYPE_SIZE) and recon.shape == (batch, observation_size)
    assert jnp.allclose(z, z_ref, atol=1e-5), "transform mismatch"
    assert jnp.allclose(recon, r_ref, atol=1e-5), "recon mismatch"

    print("KERNEL_OK")
</pallas_src>

<mosaic_0001>
module attributes {stable_mosaic.version = 11 : i64} {
  func.func @_autoencoder_kernel(%arg0: i32, %arg1: memref<4x128xf32, #tpu.memory_space<vmem>>, %arg2: memref<10x4xf32, #tpu.memory_space<vmem>>, %arg3: memref<10x1xf32, #tpu.memory_space<vmem>>, %arg4: memref<10x10xf32, #tpu.memory_space<vmem>>, %arg5: memref<10x1xf32, #tpu.memory_space<vmem>>, %arg6: memref<10x10xf32, #tpu.memory_space<vmem>>, %arg7: memref<10x1xf32, #tpu.memory_space<vmem>>, %arg8: memref<10x10xf32, #tpu.memory_space<vmem>>, %arg9: memref<10x1xf32, #tpu.memory_space<vmem>>, %arg10: memref<10x10xf32, #tpu.memory_space<vmem>>, %arg11: memref<10x1xf32, #tpu.memory_space<vmem>>, %arg12: memref<4x10xf32, #tpu.memory_space<vmem>>, %arg13: memref<4x1xf32, #tpu.memory_space<vmem>>, %arg14: memref<10x128xf32, #tpu.memory_space<vmem>>, %arg15: memref<4x128xf32, #tpu.memory_space<vmem>>) attributes {dimension_semantics = [#tpu.dimension_semantics<parallel>], iteration_bounds = array<i64: 1>, scalar_prefetch = 0 : i64, scratch_operands = 0 : i64, tpu.core_type = #tpu.core_type<tc>, window_params = [{transform_indices = @transform_0, window_bounds = array<i64: 4, 128>}, {pipeline_mode = #tpu.pipeline_mode<synchronous>, transform_indices = @transform_1, window_bounds = array<i64: 10, 4>}, {pipeline_mode = #tpu.pipeline_mode<synchronous>, transform_indices = @transform_2, window_bounds = array<i64: 10, 1>}, {pipeline_mode = #tpu.pipeline_mode<synchronous>, transform_indices = @transform_3, window_bounds = array<i64: 10, 10>}, {pipeline_mode = #tpu.pipeline_mode<synchronous>, transform_indices = @transform_4, window_bounds = array<i64: 10, 1>}, {pipeline_mode = #tpu.pipeline_mode<synchronous>, transform_indices = @transform_5, window_bounds = array<i64: 10, 10>}, {pipeline_mode = #tpu.pipeline_mode<synchronous>, transform_indices = @transform_6, window_bounds = array<i64: 10, 1>}, {pipeline_mode = #tpu.pipeline_mode<synchronous>, transform_indices = @transform_7, window_bounds = array<i64: 10, 10>}, {pipeline_mode = #tpu.pipeline_mode<synchronous>, transform_indices = @transform_8, window_bounds = array<i64: 10, 1>}, {pipeline_mode = #tpu.pipeline_mode<synchronous>, transform_indices = @transform_9, window_bounds = array<i64: 10, 10>}, {pipeline_mode = #tpu.pipeline_mode<synchronous>, transform_indices = @transform_10, window_bounds = array<i64: 10, 1>}, {pipeline_mode = #tpu.pipeline_mode<synchronous>, transform_indices = @transform_11, window_bounds = array<i64: 4, 10>}, {pipeline_mode = #tpu.pipeline_mode<synchronous>, transform_indices = @transform_12, window_bounds = array<i64: 4, 1>}, {transform_indices = @transform_13, window_bounds = array<i64: 10, 128>}, {transform_indices = @transform_14, window_bounds = array<i64: 4, 128>}]} {
    %c0 = arith.constant 0 : index
    %c0_0 = arith.constant 0 : index
    %0 = vector.load %arg1[%c0, %c0_0] : memref<4x128xf32, #tpu.memory_space<vmem>>, vector<4x128xf32>
    %c0_1 = arith.constant 0 : index
    %c0_2 = arith.constant 0 : index
    %1 = vector.load %arg2[%c0_1, %c0_2] : memref<10x4xf32, #tpu.memory_space<vmem>>, vector<10x4xf32>
    %cst = arith.constant dense<0.000000e+00> : vector<10x128xf32>
    %2 = tpu.matmul %1, %0, %cst {dimension_numbers = #tpu.dot_dimension_numbers<[1], [0], [0], [1], [0, 0, 1, 1], [], []>} : vector<10x4xf32>, vector<4x128xf32>, vector<10x128xf32> -> vector<10x128xf32>
    %c0_3 = arith.constant 0 : index
    %c0_4 = arith.constant 0 : index
    %3 = vector.load %arg3[%c0_3, %c0_4] : memref<10x1xf32, #tpu.memory_space<vmem>>, vector<10x1xf32>
    %4 = vector.broadcast %3 : vector<10x1xf32> to vector<10x128xf32>
    %5 = arith.addf %2, %4 : vector<10x128xf32>
    %cst_5 = arith.constant 0.000000e+00 : f32
    %6 = vector.broadcast %cst_5 : f32 to vector<10x128xf32>
    %7 = arith.maximumf %5, %6 : vector<10x128xf32>
    %c0_6 = arith.constant 0 : index
    %c0_7 = arith.constant 0 : index
    %8 = vector.load %arg4[%c0_6, %c0_7] : memref<10x10xf32, #tpu.memory_space<vmem>>, vector<10x10xf32>
    %cst_8 = arith.constant dense<0.000000e+00> : vector<10x128xf32>
    %9 = tpu.matmul %8, %7, %cst_8 {dimension_numbers = #tpu.dot_dimension_numbers<[1], [0], [0], [1], [0, 0, 1, 1], [], []>} : vector<10x10xf32>, vector<10x128xf32>, vector<10x128xf32> -> vector<10x128xf32>
    %c0_9 = arith.constant 0 : index
    %c0_10 = arith.constant 0 : index
    %10 = vector.load %arg5[%c0_9, %c0_10] : memref<10x1xf32, #tpu.memory_space<vmem>>, vector<10x1xf32>
    %11 = vector.broadcast %10 : vector<10x1xf32> to vector<10x128xf32>
    %12 = arith.addf %9, %11 : vector<10x128xf32>
    %cst_11 = arith.constant 0.000000e+00 : f32
    %13 = vector.broadcast %cst_11 : f32 to vector<10x128xf32>
    %14 = arith.maximumf %12, %13 : vector<10x128xf32>
    %c0_12 = arith.constant 0 : index
    %c0_13 = arith.constant 0 : index
    %15 = vector.load %arg6[%c0_12, %c0_13] : memref<10x10xf32, #tpu.memory_space<vmem>>, vector<10x10xf32>
    %cst_14 = arith.constant dense<0.000000e+00> : vector<10x128xf32>
    %16 = tpu.matmul %15, %14, %cst_14 {dimension_numbers = #tpu.dot_dimension_numbers<[1], [0], [0], [1], [0, 0, 1, 1], [], []>} : vector<10x10xf32>, vector<10x128xf32>, vector<10x128xf32> -> vector<10x128xf32>
    %c0_15 = arith.constant 0 : index
    %c0_16 = arith.constant 0 : index
    %17 = vector.load %arg7[%c0_15, %c0_16] : memref<10x1xf32, #tpu.memory_space<vmem>>, vector<10x1xf32>
    %18 = vector.broadcast %17 : vector<10x1xf32> to vector<10x128xf32>
    %19 = arith.addf %16, %18 : vector<10x128xf32>
    %cst_17 = arith.constant 0.000000e+00 : f32
    %20 = vector.broadcast %cst_17 : f32 to vector<10x128xf32>
    %21 = arith.maximumf %19, %20 : vector<10x128xf32>
    %c0_18 = arith.constant 0 : index
    %c0_19 = arith.constant 0 : index
    %22 = vector.load %arg8[%c0_18, %c0_19] : memref<10x10xf32, #tpu.memory_space<vmem>>, vector<10x10xf32>
    %cst_20 = arith.constant dense<0.000000e+00> : vector<10x128xf32>
    %23 = tpu.matmul %22, %21, %cst_20 {dimension_numbers = #tpu.dot_dimension_numbers<[1], [0], [0], [1], [0, 0, 1, 1], [], []>} : vector<10x10xf32>, vector<10x128xf32>, vector<10x128xf32> -> vector<10x128xf32>
    %c0_21 = arith.constant 0 : index
    %c0_22 = arith.constant 0 : index
    %24 = vector.load %arg9[%c0_21, %c0_22] : memref<10x1xf32, #tpu.memory_space<vmem>>, vector<10x1xf32>
    %25 = vector.broadcast %24 : vector<10x1xf32> to vector<10x128xf32>
    %26 = arith.addf %23, %25 : vector<10x128xf32>
    %cst_23 = arith.constant 0.000000e+00 : f32
    %27 = vector.broadcast %cst_23 : f32 to vector<10x128xf32>
    %28 = arith.maximumf %26, %27 : vector<10x128xf32>
    %c0_24 = arith.constant 0 : index
    %c0_25 = arith.constant 0 : index
    %29 = vector.load %arg10[%c0_24, %c0_25] : memref<10x10xf32, #tpu.memory_space<vmem>>, vector<10x10xf32>
    %cst_26 = arith.constant dense<0.000000e+00> : vector<10x128xf32>
    %30 = tpu.matmul %29, %28, %cst_26 {dimension_numbers = #tpu.dot_dimension_numbers<[1], [0], [0], [1], [0, 0, 1, 1], [], []>} : vector<10x10xf32>, vector<10x128xf32>, vector<10x128xf32> -> vector<10x128xf32>
    %c0_27 = arith.constant 0 : index
    %c0_28 = arith.constant 0 : index
    %31 = vector.load %arg11[%c0_27, %c0_28] : memref<10x1xf32, #tpu.memory_space<vmem>>, vector<10x1xf32>
    %32 = vector.broadcast %31 : vector<10x1xf32> to vector<10x128xf32>
    %33 = arith.addf %30, %32 : vector<10x128xf32>
    %cst_29 = arith.constant 0.000000e+00 : f32
    %34 = vector.broadcast %cst_29 : f32 to vector<10x128xf32>
    %35 = arith.maximumf %33, %34 : vector<10x128xf32>
    %c0_30 = arith.constant 0 : index
    %c0_31 = arith.constant 0 : index
    %36 = vector.load %arg12[%c0_30, %c0_31] : memref<4x10xf32, #tpu.memory_space<vmem>>, vector<4x10xf32>
    %cst_32 = arith.constant dense<0.000000e+00> : vector<4x128xf32>
    %37 = tpu.matmul %36, %35, %cst_32 {dimension_numbers = #tpu.dot_dimension_numbers<[1], [0], [0], [1], [0, 0, 1, 1], [], []>} : vector<4x10xf32>, vector<10x128xf32>, vector<4x128xf32> -> vector<4x128xf32>
    %c0_33 = arith.constant 0 : index
    %c0_34 = arith.constant 0 : index
    %38 = vector.load %arg13[%c0_33, %c0_34] : memref<4x1xf32, #tpu.memory_space<vmem>>, vector<4x1xf32>
    %39 = vector.broadcast %38 : vector<4x1xf32> to vector<4x128xf32>
    %40 = arith.addf %37, %39 : vector<4x128xf32>
    %c0_35 = arith.constant 0 : index
    %c0_36 = arith.constant 0 : index
    %41 = vector.load %arg14[%c0_35, %c0_36] : memref<10x128xf32, #tpu.memory_space<vmem>>, vector<10x128xf32>
    tpu.vector_store %arg14[%c0_35, %c0_36], %21 {strides = array<i32>} : memref<10x128xf32, #tpu.memory_space<vmem>>, vector<10x128xf32>,
    %c0_37 = arith.constant 0 : index
    %c0_38 = arith.constant 0 : index
    %42 = vector.load %arg15[%c0_37, %c0_38] : memref<4x128xf32, #tpu.memory_space<vmem>>, vector<4x128xf32>
    tpu.vector_store %arg15[%c0_37, %c0_38], %40 {strides = array<i32>} : memref<4x128xf32, #tpu.memory_space<vmem>>, vector<4x128xf32>,
    return
  }
  func.func @transform_0(%arg0: i32) -> (i32, i32) {
    %c0_i32 = arith.constant 0 : i32
    %c0_i32_0 = arith.constant 0 : i32
    return %c0_i32, %arg0 : i32, i32
  }
  func.func @transform_1(%arg0: i32) -> (i32, i32) {
    %c0_i32 = arith.constant 0 : i32
    %c0_i32_0 = arith.constant 0 : i32
    %c0_i32_1 = arith.constant 0 : i32
    return %c0_i32, %c0_i32_0 : i32, i32
  }
  func.func @transform_2(%arg0: i32) -> (i32, i32) {
    %c0_i32 = arith.constant 0 : i32
    %c0_i32_0 = arith.constant 0 : i32
    %c0_i32_1 = arith.constant 0 : i32
    return %c0_i32, %c0_i32_0 : i32, i32
  }
  func.func @transform_3(%arg0: i32) -> (i32, i32) {
    %c0_i32 = arith.constant 0 : i32
    %c0_i32_0 = arith.constant 0 : i32
    %c0_i32_1 = arith.constant 0 : i32
    return %c0_i32, %c0_i32_0 : i32, i32
  }
  func.func @transform_4(%arg0: i32) -> (i32, i32) {
    %c0_i32 = arith.constant 0 : i32
    %c0_i32_0 = arith.constant 0 : i32
    %c0_i32_1 = arith.constant 0 : i32
    return %c0_i32, %c0_i32_0 : i32, i32
  }
  func.func @transform_5(%arg0: i32) -> (i32, i32) {
    %c0_i32 = arith.constant 0 : i32
    %c0_i32_0 = arith.constant 0 : i32
    %c0_i32_1 = arith.constant 0 : i32
    return %c0_i32, %c0_i32_0 : i32, i32
  }
  func.func @transform_6(%arg0: i32) -> (i32, i32) {
    %c0_i32 = arith.constant 0 : i32
    %c0_i32_0 = arith.constant 0 : i32
    %c0_i32_1 = arith.constant 0 : i32
    return %c0_i32, %c0_i32_0 : i32, i32
  }
  func.func @transform_7(%arg0: i32) -> (i32, i32) {
    %c0_i32 = arith.constant 0 : i32
    %c0_i32_0 = arith.constant 0 : i32
    %c0_i32_1 = arith.constant 0 : i32
    return %c0_i32, %c0_i32_0 : i32, i32
  }
  func.func @transform_8(%arg0: i32) -> (i32, i32) {
    %c0_i32 = arith.constant 0 : i32
    %c0_i32_0 = arith.constant 0 : i32
    %c0_i32_1 = arith.constant 0 : i32
    return %c0_i32, %c0_i32_0 : i32, i32
  }
  func.func @transform_9(%arg0: i32) -> (i32, i32) {
    %c0_i32 = arith.constant 0 : i32
    %c0_i32_0 = arith.constant 0 : i32
    %c0_i32_1 = arith.constant 0 : i32
    return %c0_i32, %c0_i32_0 : i32, i32
  }
  func.func @transform_10(%arg0: i32) -> (i32, i32) {
    %c0_i32 = arith.constant 0 : i32
    %c0_i32_0 = arith.constant 0 : i32
    %c0_i32_1 = arith.constant 0 : i32
    return %c0_i32, %c0_i32_0 : i32, i32
  }
  func.func @transform_11(%arg0: i32) -> (i32, i32) {
    %c0_i32 = arith.constant 0 : i32
    %c0_i32_0 = arith.constant 0 : i32
    %c0_i32_1 = arith.constant 0 : i32
    return %c0_i32, %c0_i32_0 : i32, i32
  }
  func.func @transform_12(%arg0: i32) -> (i32, i32) {
    %c0_i32 = arith.constant 0 : i32
    %c0_i32_0 = arith.constant 0 : i32
    %c0_i32_1 = arith.constant 0 : i32
    return %c0_i32, %c0_i32_0 : i32, i32
  }
  func.func @transform_13(%arg0: i32) -> (i32, i32) {
    %c0_i32 = arith.constant 0 : i32
    %c0_i32_0 = arith.constant 0 : i32
    return %c0_i32, %arg0 : i32, i32
  }
  func.func @transform_14(%arg0: i32) -> (i32, i32) {
    %c0_i32 = arith.constant 0 : i32
    %c0_i32_0 = arith.constant 0 : i32
    return %c0_i32, %arg0 : i32, i32
  }
}

</mosaic_0001>

<llo_original>
// kernel: autoencoder_forward.1
$region0: #{autoencoder_forward.1}
  #allocation0 [shape = 'u32[]', space=smem, size = 0x4, offset = 0x4, fixed_abs, tag = 'smem constant byte address 0x4 - core index']
  #allocation1 [shape = 'u32[144,128]{1,0:T(1,128)}', space=vmem, size = 0x12000, scoped, tag = 'internal scratch']
  %s0 = inlined_call_operand.vmem [shape: f32[4,128], index: 0, kind: input, shape index: {}]
  %s1 = inlined_call_operand.vmem [shape: f32[10,4], index: 1, kind: input, shape index: {}]
  %s2 = inlined_call_operand.vmem [shape: f32[10,1], index: 2, kind: input, shape index: {}]
  %s3 = inlined_call_operand.vmem [shape: f32[10,10], index: 3, kind: input, shape index: {}]
  %s4 = inlined_call_operand.vmem [shape: f32[10,1], index: 4, kind: input, shape index: {}]
  %s5 = inlined_call_operand.vmem [shape: f32[10,10], index: 5, kind: input, shape index: {}]
  %s6 = inlined_call_operand.vmem [shape: f32[10,1], index: 6, kind: input, shape index: {}]
  %s7 = inlined_call_operand.vmem [shape: f32[10,10], index: 7, kind: input, shape index: {}]
  %s8 = inlined_call_operand.vmem [shape: f32[10,1], index: 8, kind: input, shape index: {}]
  %s9 = inlined_call_operand.vmem [shape: f32[10,10], index: 9, kind: input, shape index: {}]
  %s10 = inlined_call_operand.vmem [shape: f32[10,1], index: 10, kind: input, shape index: {}]
  %s11 = inlined_call_operand.vmem [shape: f32[4,10], index: 11, kind: input, shape index: {}]
  %s12 = inlined_call_operand.vmem [shape: f32[4,1], index: 12, kind: input, shape index: {}]
  %s13 = inlined_call_operand.vmem [shape: f32[10,128], index: 13, kind: output, shape index: {0}]
  %s14 = inlined_call_operand.vmem [shape: f32[4,128], index: 14, kind: output, shape index: {1}]
  %15 = xla_tuple %s13, %s14
  %s16 = sld [smem:[#allocation0]]
  $region70: #{autoencoder_forward.1} parent=0
    _
  %s18 = ssub.s32 1, %s16
  %s19 = scalar_select 0, %s18, %s16
  // Predicated region
  $region2: #{autoencoder_forward.1} parent=0 // pred_check
    _
  $region3: #{autoencoder_forward.1} parent=0 // pred_check_branch
    %21 = sbr.rel (0) target = $region5
  $region4: #{autoencoder_forward.1} parent=0 // pred_region
    _
  $region5: #{autoencoder_forward.1} parent=0 // pred_fallthru
    _
  // Predicated region
  $region6: #{autoencoder_forward.1} parent=0 // pred_check
    _
  $region7: #{autoencoder_forward.1} parent=0 // pred_check_branch
    %23 = sbr.rel (0) target = $region9
  $region8: #{autoencoder_forward.1} parent=0 // pred_region
    _
  $region9: #{autoencoder_forward.1} parent=0 // pred_fallthru
    _
  // Predicated region
  $region10: #{autoencoder_forward.1} parent=0 // pred_check
    _
  $region11: #{autoencoder_forward.1} parent=0 // pred_check_branch
    %25 = sbr.rel (0) target = $region13
  $region12: #{autoencoder_forward.1} parent=0 // pred_region
    _
  $region13: #{autoencoder_forward.1} parent=0 // pred_fallthru
    _
  // Predicated region
  $region14: #{autoencoder_forward.1} parent=0 // pred_check
    _
  $region15: #{autoencoder_forward.1} parent=0 // pred_check_branch
    %27 = sbr.rel (0) target = $region17
  $region16: #{autoencoder_forward.1} parent=0 // pred_region
    _
  $region17: #{autoencoder_forward.1} parent=0 // pred_fallthru
    _
  // Predicated region
  $region18: #{autoencoder_forward.1} parent=0 // pred_check
    _
  $region19: #{autoencoder_forward.1} parent=0 // pred_check_branch
    %29 = sbr.rel (0) target = $region21
  $region20: #{autoencoder_forward.1} parent=0 // pred_region
    _
  $region21: #{autoencoder_forward.1} parent=0 // pred_fallthru
    _
  // Predicated region
  $region22: #{autoencoder_forward.1} parent=0 // pred_check
    _
  $region23: #{autoencoder_forward.1} parent=0 // pred_check_branch
    %31 = sbr.rel (0) target = $region25
  $region24: #{autoencoder_forward.1} parent=0 // pred_region
    _
  $region25: #{autoencoder_forward.1} parent=0 // pred_fallthru
    _
  // Predicated region
  $region26: #{autoencoder_forward.1} parent=0 // pred_check
    _
  $region27: #{autoencoder_forward.1} parent=0 // pred_check_branch
    %33 = sbr.rel (0) target = $region29
  $region28: #{autoencoder_forward.1} parent=0 // pred_region
    _
  $region29: #{autoencoder_forward.1} parent=0 // pred_fallthru
    _
  // Predicated region
  $region30: #{autoencoder_forward.1} parent=0 // pred_check
    _
  $region31: #{autoencoder_forward.1} parent=0 // pred_check_branch
    %35 = sbr.rel (0) target = $region33
  $region32: #{autoencoder_forward.1} parent=0 // pred_region
    _
  $region33: #{autoencoder_forward.1} parent=0 // pred_fallthru
    _
  // Predicated region
  $region34: #{autoencoder_forward.1} parent=0 // pred_check
    _
  $region35: #{autoencoder_forward.1} parent=0 // pred_check_branch
    %37 = sbr.rel (0) target = $region37
  $region36: #{autoencoder_forward.1} parent=0 // pred_region
    _
  $region37: #{autoencoder_forward.1} parent=0 // pred_fallthru
    _
  // Predicated region
  $region38: #{autoencoder_forward.1} parent=0 // pred_check
    _
  $region39: #{autoencoder_forward.1} parent=0 // pred_check_branch
    %39 = sbr.rel (0) target = $region41
  $region40: #{autoencoder_forward.1} parent=0 // pred_region
    _
  $region41: #{autoencoder_forward.1} parent=0 // pred_fallthru
    _
  // Predicated region
  $region42: #{autoencoder_forward.1} parent=0 // pred_check
    _
  $region43: #{autoencoder_forward.1} parent=0 // pred_check_branch
    %41 = sbr.rel (0) target = $region45
  $region44: #{autoencoder_forward.1} parent=0 // pred_region
    _
  $region45: #{autoencoder_forward.1} parent=0 // pred_fallthru
    _
  // Predicated region
  $region46: #{autoencoder_forward.1} parent=0 // pred_check
    _
  $region47: #{autoencoder_forward.1} parent=0 // pred_check_branch
    %43 = sbr.rel (0) target = $region49
  $region48: #{autoencoder_forward.1} parent=0 // pred_region
    _
  $region49: #{autoencoder_forward.1} parent=0 // pred_fallthru
    _
  // Predicated region
  $region50: #{autoencoder_forward.1} parent=0 // pred_check
    _
  $region51: #{autoencoder_forward.1} parent=0 // pred_check_branch
    %45 = sbr.rel (0) target = $region53
  $region52: #{autoencoder_forward.1} parent=0 // pred_region
    _
  $region53: #{autoencoder_forward.1} parent=0 // pred_fallthru
    _
  %v46 = vld [vmem:[%s0] sm:$0xf]
  %v47 = vld [vmem:[%s1] sm:$0xff]
  %v48 = vld [vmem:[%s1 + $0x8] sm:$0x3]
  %v49 = vld [vmem:[%s2] sm:$0xff]
  %v50 = vld [vmem:[%s2 + $0x8] sm:$0x3]
  %52 = vset.pattern.permute.xlu0 0
  %53 = vperm.xlu0 %52, %v49
  %v54 = vpop.permute.xlu0 %53
  %57 = vset.pattern.permute.xlu0 0
  %58 = vperm.xlu0 %57, %v50
  %v59 = vpop.permute.xlu0 %58
  %vm61 = vcmask 31744
  %v63 = vsel %vm61, %v47, 0
  %v66 = vsel %vm61, %v48, 0
  %vm68 = vcmask 1043456
  %v70 = vsel %vm68, %v46, 0
  %72 = vmatprep.subr.mxu0 0.0
  %73 = vmatpush1.msra.mxu0 %v70
  %74 = vmatprep.subr.mxu0 0.0
  %75 = vmatpush1.msra.mxu0 0.0
  %76 = vmatprep.subr.mxu0 0.0
  %77 = vmatpush1.msra.mxu0 0.0
  %78 = vmatprep.subr.mxu0 0.0
  %79 = vmatpush1.msra.mxu0 0.0
  %80 = vmatprep.subr.mxu0 0.0
  %81 = vmatpush1.msra.mxu0 0.0
  %82 = vmatprep.subr.mxu0 0.0
  %83 = vmatpush1.msra.mxu0 0.0
  %84 = vmatprep.subr.mxu0 0.0
  %85 = vmatpush1.msra.mxu0 0.0
  %86 = vmatprep.subr.mxu0 0.0
  %87 = vmatpush1.msra.mxu0 0.0
  %88 = vmatprep.subr.mxu0 0.0
  %89 = vmatpush1.msra.mxu0 0.0
  %90 = vmatprep.subr.mxu0 0.0
  %91 = vmatpush1.msra.mxu0 0.0
  %92 = vmatprep.subr.mxu0 0.0
  %93 = vmatpush1.msra.mxu0 0.0
  %94 = vmatprep.subr.mxu0 0.0
  %95 = vmatpush1.msra.mxu0 0.0
  %96 = vmatprep.subr.mxu0 0.0
  %97 = vmatpush1.msra.mxu0 0.0
  %98 = vmatprep.subr.mxu0 0.0
  %99 = vmatpush1.msra.mxu0 0.0
  %100 = vmatprep.subr.mxu0 0.0
  %101 = vmatpush1.msra.mxu0 0.0
  %102 = vmatprep.subr.mxu0 0.0
  %103 = vmatpush1.msra.mxu0 0.0
  %104 = vmatprep.subr.mxu0 0.0
  %105 = vmatpush1.msra.mxu0 0.0
  %106 = vmatprep.subr.mxu0 0.0
  %107 = vmatpush1.msra.mxu0 0.0
  %108 = vmatprep.subr.mxu0 0.0
  %109 = vmatpush1.msra.mxu0 0.0
  %110 = vmatprep.subr.mxu0 0.0
  %111 = vmatpush1.msra.mxu0 0.0
  %112 = vmatprep.subr.mxu0 0.0
  %113 = vmatpush1.msra.mxu0 0.0
  %114 = vmatprep.subr.mxu0 0.0
  %115 = vmatpush1.msra.mxu0 0.0
  %116 = vmatprep.subr.mxu0 0.0
  %117 = vmatpush1.msra.mxu0 0.0
  %118 = vmatprep.subr.mxu0 0.0
  %119 = vmatpush1.msra.mxu0 0.0
  %120 = vmatprep.subr.mxu0 0.0
  %121 = vmatpush1.msra.mxu0 0.0
  %122 = vmatprep.subr.mxu0 0.0
  %123 = vmatpush1.msra.mxu0 0.0
  %124 = vmatprep.subr.mxu0 0.0
  %125 = vmatpush1.msra.mxu0 0.0
  %126 = vmatprep.subr.mxu0 0.0
  %127 = vmatpush1.msra.mxu0 0.0
  %128 = vmatprep.subr.mxu0 0.0
  %129 = vmatpush1.msra.mxu0 0.0
  %130 = vmatprep.subr.mxu0 0.0
  %131 = vmatpush1.msra.mxu0 0.0
  %132 = vmatprep.subr.mxu0 0.0
  %133 = vmatpush1.msra.mxu0 0.0
  %134 = vmatprep.subr.mxu0 0.0
  %135 = vmatpush1.msra.mxu0 0.0
  %136 = vmatprep.mubr.f32.mxu0 0.0
  %137 = vmatmul.mubr.f32.gmra.mrb[0].mxu0 %v63
  %v138 = vpop.f32.mrb[0].mxu0
  %v139 = vadd.f32 %v54, %v138
  %v140 = vpop.f32.mrb[0].mxu0
  %141 = vmatprep.mubr.f32.mxu0 0.0
  %142 = vmatmul.mubr.f32.gmra.mrb[0].mxu0 %v66
  %v143 = vpop.f32.mrb[0].mxu0
  %v144 = vadd.f32 %v59, %v143
  %v145 = vpop.f32.mrb[0].mxu0
  %146 = vdwg.mxu0
  %v147 = vmax.f32 %v139, 0.0
  %v148 = vmax.f32 %v144, 0.0
  %v149 = vld [vmem:[%s3] sm:$0xff]
  %v150 = vld [vmem:[%s3 + $0x8] sm:$0x3]
  %v151 = vld [vmem:[%s4] sm:$0xff]
  %v152 = vld [vmem:[%s4 + $0x8] sm:$0x3]
  %154 = vset.pattern.permute.xlu0 0
  %155 = vperm.xlu0 %154, %v151
  %v156 = vpop.permute.xlu0 %155
  %159 = vset.pattern.permute.xlu0 0
  %160 = vperm.xlu0 %159, %v152
  %v161 = vpop.permute.xlu0 %160
  %vm163 = vcmask 80896
  %v165 = vsel %vm163, %v149, 0
  %v168 = vsel %vm163, %v150, 0
  %vm170 = vcmask 1041408
  %v172 = vsel %vm170, %v148, 0
  %174 = vmatprep.subr.mxu0 0.0
  %175 = vmatpush1.msra.mxu0 %v147
  %176 = vmatprep.subr.mxu0 0.0
  %177 = vmatpush1.msra.mxu0 %v172
  %178 = vmatprep.subr.mxu0 0.0
  %179 = vmatpush1.msra.mxu0 0.0
  %180 = vmatprep.subr.mxu0 0.0
  %181 = vmatpush1.msra.mxu0 0.0
  %182 = vmatprep.subr.mxu0 0.0
  %183 = vmatpush1.msra.mxu0 0.0
  %184 = vmatprep.subr.mxu0 0.0
  %185 = vmatpush1.msra.mxu0 0.0
  %186 = vmatprep.subr.mxu0 0.0
  %187 = vmatpush1.msra.mxu0 0.0
  %188 = vmatprep.subr.mxu0 0.0
  %189 = vmatpush1.msra.mxu0 0.0
  %190 = vmatprep.subr.mxu0 0.0
  %191 = vmatpush1.msra.mxu0 0.0
  %192 = vmatprep.subr.mxu0 0.0
  %193 = vmatpush1.msra.mxu0 0.0
  %194 = vmatprep.subr.mxu0 0.0
  %195 = vmatpush1.msra.mxu0 0.0
  %196 = vmatprep.subr.mxu0 0.0
  %197 = vmatpush1.msra.mxu0 0.0
  %198 = vmatprep.subr.mxu0 0.0
  %199 = vmatpush1.msra.mxu0 0.0
  %200 = vmatprep.subr.mxu0 0.0
  %201 = vmatpush1.msra.mxu0 0.0
  %202 = vmatprep.subr.mxu0 0.0
  %203 = vmatpush1.msra.mxu0 0.0
  %204 = vmatprep.subr.mxu0 0.0
  %205 = vmatpush1.msra.mxu0 0.0
  %206 = vmatprep.subr.mxu0 0.0
  %207 = vmatpush1.msra.mxu0 0.0
  %208 = vmatprep.subr.mxu0 0.0
  %209 = vmatpush1.msra.mxu0 0.0
  %210 = vmatprep.subr.mxu0 0.0
  %211 = vmatpush1.msra.mxu0 0.0
  %212 = vmatprep.subr.mxu0 0.0
  %213 = vmatpush1.msra.mxu0 0.0
  %214 = vmatprep.subr.mxu0 0.0
  %215 = vmatpush1.msra.mxu0 0.0
  %216 = vmatprep.subr.mxu0 0.0
  %217 = vmatpush1.msra.mxu0 0.0
  %218 = vmatprep.subr.mxu0 0.0
  %219 = vmatpush1.msra.mxu0 0.0
  %220 = vmatprep.subr.mxu0 0.0
  %221 = vmatpush1.msra.mxu0 0.0
  %222 = vmatprep.subr.mxu0 0.0
  %223 = vmatpush1.msra.mxu0 0.0
  %224 = vmatprep.subr.mxu0 0.0
  %225 = vmatpush1.msra.mxu0 0.0
  %226 = vmatprep.subr.mxu0 0.0
  %227 = vmatpush1.msra.mxu0 0.0
  %228 = vmatprep.subr.mxu0 0.0
  %229 = vmatpush1.msra.mxu0 0.0
  %230 = vmatprep.subr.mxu0 0.0
  %231 = vmatpush1.msra.mxu0 0.0
  %232 = vmatprep.subr.mxu0 0.0
  %233 = vmatpush1.msra.mxu0 0.0
  %234 = vmatprep.subr.mxu0 0.0
  %235 = vmatpush1.msra.mxu0 0.0
  %236 = vmatprep.subr.mxu0 0.0
  %237 = vmatpush1.msra.mxu0 0.0
  %238 = vmatprep.mubr.f32.mxu0 0.0
  %239 = vmatmul.mubr.f32.gmra.mrb[0].mxu0 %v165
  %v240 = vpop.f32.mrb[0].mxu0
  %v241 = vadd.f32 %v156, %v240
  %v242 = vpop.f32.mrb[0].mxu0
  %243 = vmatprep.mubr.f32.mxu0 0.0
  %244 = vmatmul.mubr.f32.gmra.mrb[0].mxu0 %v168
  %v245 = vpop.f32.mrb[0].mxu0
  %v246 = vadd.f32 %v161, %v245
  %v247 = vpop.f32.mrb[0].mxu0
  %248 = vdwg.mxu0
  %v249 = vmax.f32 %v241, 0.0
  %v250 = vmax.f32 %v246, 0.0
  %v251 = vld [vmem:[%s5] sm:$0xff]
  %v252 = vld [vmem:[%s5 + $0x8] sm:$0x3]
  %v253 = vld [vmem:[%s6] sm:$0xff]
  %v254 = vld [vmem:[%s6 + $0x8] sm:$0x3]
  %256 = vset.pattern.permute.xlu0 0
  %257 = vperm.xlu0 %256, %v253
  %v258 = vpop.permute.xlu0 %257
  %261 = vset.pattern.permute.xlu0 0
  %262 = vperm.xlu0 %261, %v254
  %v263 = vpop.permute.xlu0 %262
  %v266 = vsel %vm163, %v251, 0
  %v269 = vsel %vm163, %v252, 0
  %v272 = vsel %vm170, %v250, 0
  %274 = vmatprep.subr.mxu0 0.0
  %275 = vmatpush1.msra.mxu0 %v249
  %276 = vmatprep.subr.mxu0 0.0
  %277 = vmatpush1.msra.mxu0 %v272
  %278 = vmatprep.subr.mxu0 0.0
  %279 = vmatpush1.msra.mxu0 0.0
  %280 = vmatprep.subr.mxu0 0.0
  %281 = vmatpush1.msra.mxu0 0.0
  %282 = vmatprep.subr.mxu0 0.0
  %283 = vmatpush1.msra.mxu0 0.0
  %284 = vmatprep.subr.mxu0 0.0
  %285 = vmatpush1.msra.mxu0 0.0
  %286 = vmatprep.subr.mxu0 0.0
  %287 = vmatpush1.msra.mxu0 0.0
  %288 = vmatprep.subr.mxu0 0.0
  %289 = vmatpush1.msra.mxu0 0.0
  %290 = vmatprep.subr.mxu0 0.0
  %291 = vmatpush1.msra.mxu0 0.0
  %292 = vmatprep.subr.mxu0 0.0
  %293 = vmatpush1.msra.mxu0 0.0
  %294 = vmatprep.subr.mxu0 0.0
  %295 = vmatpush1.msra.mxu0 0.0
  %296 = vmatprep.subr.mxu0 0.0
  %297 = vmatpush1.msra.mxu0 0.0
  %298 = vmatprep.subr.mxu0 0.0
  %299 = vmatpush1.msra.mxu0 0.0
  %300 = vmatprep.subr.mxu0 0.0
  %301 = vmatpush1.msra.mxu0 0.0
  %302 = vmatprep.subr.mxu0 0.0
  %303 = vmatpush1.msra.mxu0 0.0
  %304 = vmatprep.subr.mxu0 0.0
  %305 = vmatpush1.msra.mxu0 0.0
  %306 = vmatprep.subr.mxu0 0.0
  %307 = vmatpush1.msra.mxu0 0.0
  %308 = vmatprep.subr.mxu0 0.0
  %309 = vmatpush1.msra.mxu0 0.0
  %310 = vmatprep.subr.mxu0 0.0
  %311 = vmatpush1.msra.mxu0 0.0
  %312 = vmatprep.subr.mxu0 0.0
  %313 = vmatpush1.msra.mxu0 0.0
  %314 = vmatprep.subr.mxu0 0.0
  %315 = vmatpush1.msra.mxu0 0.0
  %316 = vmatprep.subr.mxu0 0.0
  %317 = vmatpush1.msra.mxu0 0.0
  %318 = vmatprep.subr.mxu0 0.0
  %319 = vmatpush1.msra.mxu0 0.0
  %320 = vmatprep.subr.mxu0 0.0
  %321 = vmatpush1.msra.mxu0 0.0
  %322 = vmatprep.subr.mxu0 0.0
  %323 = vmatpush1.msra.mxu0 0.0
  %324 = vmatprep.subr.mxu0 0.0
  %325 = vmatpush1.msra.mxu0 0.0
  %326 = vmatprep.subr.mxu0 0.0
  %327 = vmatpush1.msra.mxu0 0.0
  %328 = vmatprep.subr.mxu0 0.0
  %329 = vmatpush1.msra.mxu0 0.0
  %330 = vmatprep.subr.mxu0 0.0
  %331 = vmatpush1.msra.mxu0 0.0
  %332 = vmatprep.subr.mxu0 0.0
  %333 = vmatpush1.msra.mxu0 0.0
  %334 = vmatprep.subr.mxu0 0.0
  %335 = vmatpush1.msra.mxu0 0.0
  %336 = vmatprep.subr.mxu0 0.0
  %337 = vmatpush1.msra.mxu0 0.0
  %338 = vmatprep.mubr.f32.mxu0 0.0
  %339 = vmatmul.mubr.f32.gmra.mrb[0].mxu0 %v266
  %v340 = vpop.f32.mrb[0].mxu0
  %v341 = vadd.f32 %v258, %v340
  %v342 = vpop.f32.mrb[0].mxu0
  %343 = vmatprep.mubr.f32.mxu0 0.0
  %344 = vmatmul.mubr.f32.gmra.mrb[0].mxu0 %v269
  %v345 = vpop.f32.mrb[0].mxu0
  %v346 = vadd.f32 %v263, %v345
  %v347 = vpop.f32.mrb[0].mxu0
  %348 = vdwg.mxu0
  %v349 = vmax.f32 %v341, 0.0
  %v350 = vmax.f32 %v346, 0.0
  %v351 = vld [vmem:[%s7] sm:$0xff]
  %v352 = vld [vmem:[%s7 + $0x8] sm:$0x3]
  %v353 = vld [vmem:[%s8] sm:$0xff]
  %v354 = vld [vmem:[%s8 + $0x8] sm:$0x3]
  %356 = vset.pattern.permute.xlu0 0
  %357 = vperm.xlu0 %356, %v353
  %v358 = vpop.permute.xlu0 %357
  %361 = vset.pattern.permute.xlu0 0
  %362 = vperm.xlu0 %361, %v354
  %v363 = vpop.permute.xlu0 %362
  %v366 = vsel %vm163, %v351, 0
  %v369 = vsel %vm163, %v352, 0
  %v372 = vsel %vm170, %v350, 0
  %374 = vmatprep.subr.mxu0 0.0
  %375 = vmatpush1.msra.mxu0 %v349
  %376 = vmatprep.subr.mxu0 0.0
  %377 = vmatpush1.msra.mxu0 %v372
  %378 = vmatprep.subr.mxu0 0.0
  %379 = vmatpush1.msra.mxu0 0.0
  %380 = vmatprep.subr.mxu0 0.0
  %381 = vmatpush1.msra.mxu0 0.0
  %382 = vmatprep.subr.mxu0 0.0
  %383 = vmatpush1.msra.mxu0 0.0
  %384 = vmatprep.subr.mxu0 0.0
  %385 = vmatpush1.msra.mxu0 0.0
  %386 = vmatprep.subr.mxu0 0.0
  %387 = vmatpush1.msra.mxu0 0.0
  %388 = vmatprep.subr.mxu0 0.0
  %389 = vmatpush1.msra.mxu0 0.0
  %390 = vmatprep.subr.mxu0 0.0
  %391 = vmatpush1.msra.mxu0 0.0
  %392 = vmatprep.subr.mxu0 0.0
  %393 = vmatpush1.msra.mxu0 0.0
  %394 = vmatprep.subr.mxu0 0.0
  %395 = vmatpush1.msra.mxu0 0.0
  %396 = vmatprep.subr.mxu0 0.0
  %397 = vmatpush1.msra.mxu0 0.0
  %398 = vmatprep.subr.mxu0 0.0
  %399 = vmatpush1.msra.mxu0 0.0
  %400 = vmatprep.subr.mxu0 0.0
  %401 = vmatpush1.msra.mxu0 0.0
  %402 = vmatprep.subr.mxu0 0.0
  %403 = vmatpush1.msra.mxu0 0.0
  %404 = vmatprep.subr.mxu0 0.0
  %405 = vmatpush1.msra.mxu0 0.0
  %406 = vmatprep.subr.mxu0 0.0
  %407 = vmatpush1.msra.mxu0 0.0
  %408 = vmatprep.subr.mxu0 0.0
  %409 = vmatpush1.msra.mxu0 0.0
  %410 = vmatprep.subr.mxu0 0.0
  %411 = vmatpush1.msra.mxu0 0.0
  %412 = vmatprep.subr.mxu0 0.0
  %413 = vmatpush1.msra.mxu0 0.0
  %414 = vmatprep.subr.mxu0 0.0
  %415 = vmatpush1.msra.mxu0 0.0
  %416 = vmatprep.subr.mxu0 0.0
  %417 = vmatpush1.msra.mxu0 0.0
  %418 = vmatprep.subr.mxu0 0.0
  %419 = vmatpush1.msra.mxu0 0.0
  %420 = vmatprep.subr.mxu0 0.0
  %421 = vmatpush1.msra.mxu0 0.0
  %422 = vmatprep.subr.mxu0 0.0
  %423 = vmatpush1.msra.mxu0 0.0
  %424 = vmatprep.subr.mxu0 0.0
  %425 = vmatpush1.msra.mxu0 0.0
  %426 = vmatprep.subr.mxu0 0.0
  %427 = vmatpush1.msra.mxu0 0.0
  %428 = vmatprep.subr.mxu0 0.0
  %429 = vmatpush1.msra.mxu0 0.0
  %430 = vmatprep.subr.mxu0 0.0
  %431 = vmatpush1.msra.mxu0 0.0
  %432 = vmatprep.subr.mxu0 0.0
  %433 = vmatpush1.msra.mxu0 0.0
  %434 = vmatprep.subr.mxu0 0.0
  %435 = vmatpush1.msra.mxu0 0.0
  %436 = vmatprep.subr.mxu0 0.0
  %437 = vmatpush1.msra.mxu0 0.0
  %438 = vmatprep.mubr.f32.mxu0 0.0
  %439 = vmatmul.mubr.f32.gmra.mrb[0].mxu0 %v366
  %v440 = vpop.f32.mrb[0].mxu0
  %v441 = vadd.f32 %v358, %v440
  %v442 = vpop.f32.mrb[0].mxu0
  %443 = vmatprep.mubr.f32.mxu0 0.0
  %444 = vmatmul.mubr.f32.gmra.mrb[0].mxu0 %v369
  %v445 = vpop.f32.mrb[0].mxu0
  %v446 = vadd.f32 %v363, %v445
  %v447 = vpop.f32.mrb[0].mxu0
  %448 = vdwg.mxu0
  %v449 = vmax.f32 %v441, 0.0
  %v450 = vmax.f32 %v446, 0.0
  %v451 = vld [vmem:[%s9] sm:$0xff]
  %v452 = vld [vmem:[%s9 + $0x8] sm:$0x3]
  %v453 = vld [vmem:[%s10] sm:$0xff]
  %v454 = vld [vmem:[%s10 + $0x8] sm:$0x3]
  %456 = vset.pattern.permute.xlu0 0
  %457 = vperm.xlu0 %456, %v453
  %v458 = vpop.permute.xlu0 %457
  %461 = vset.pattern.permute.xlu0 0
  %462 = vperm.xlu0 %461, %v454
  %v463 = vpop.permute.xlu0 %462
  %v466 = vsel %vm163, %v451, 0
  %v469 = vsel %vm163, %v452, 0
  %v472 = vsel %vm170, %v450, 0
  %474 = vmatprep.subr.mxu0 0.0
  %475 = vmatpush1.msra.mxu0 %v449
  %476 = vmatprep.subr.mxu0 0.0
  %477 = vmatpush1.msra.mxu0 %v472
  %478 = vmatprep.subr.mxu0 0.0
  %479 = vmatpush1.msra.mxu0 0.0
  %480 = vmatprep.subr.mxu0 0.0
  %481 = vmatpush1.msra.mxu0 0.0
  %482 = vmatprep.subr.mxu0 0.0
  %483 = vmatpush1.msra.mxu0 0.0
  %484 = vmatprep.subr.mxu0 0.0
  %485 = vmatpush1.msra.mxu0 0.0
  %486 = vmatprep.subr.mxu0 0.0
  %487 = vmatpush1.msra.mxu0 0.0
  %488 = vmatprep.subr.mxu0 0.0
  %489 = vmatpush1.msra.mxu0 0.0
  %490 = vmatprep.subr.mxu0 0.0
  %491 = vmatpush1.msra.mxu0 0.0
  %492 = vmatprep.subr.mxu0 0.0
  %493 = vmatpush1.msra.mxu0 0.0
  %494 = vmatprep.subr.mxu0 0.0
  %495 = vmatpush1.msra.mxu0 0.0
  %496 = vmatprep.subr.mxu0 0.0
  %497 = vmatpush1.msra.mxu0 0.0
  %498 = vmatprep.subr.mxu0 0.0
  %499 = vmatpush1.msra.mxu0 0.0
  %500 = vmatprep.subr.mxu0 0.0
  %501 = vmatpush1.msra.mxu0 0.0
  %502 = vmatprep.subr.mxu0 0.0
  %503 = vmatpush1.msra.mxu0 0.0
  %504 = vmatprep.subr.mxu0 0.0
  %505 = vmatpush1.msra.mxu0 0.0
  %506 = vmatprep.subr.mxu0 0.0
  %507 = vmatpush1.msra.mxu0 0.0
  %508 = vmatprep.subr.mxu0 0.0
  %509 = vmatpush1.msra.mxu0 0.0
  %510 = vmatprep.subr.mxu0 0.0
  %511 = vmatpush1.msra.mxu0 0.0
  %512 = vmatprep.subr.mxu0 0.0
  %513 = vmatpush1.msra.mxu0 0.0
  %514 = vmatprep.subr.mxu0 0.0
  %515 = vmatpush1.msra.mxu0 0.0
  %516 = vmatprep.subr.mxu0 0.0
  %517 = vmatpush1.msra.mxu0 0.0
  %518 = vmatprep.subr.mxu0 0.0
  %519 = vmatpush1.msra.mxu0 0.0
  %520 = vmatprep.subr.mxu0 0.0
  %521 = vmatpush1.msra.mxu0 0.0
  %522 = vmatprep.subr.mxu0 0.0
  %523 = vmatpush1.msra.mxu0 0.0
  %524 = vmatprep.subr.mxu0 0.0
  %525 = vmatpush1.msra.mxu0 0.0
  %526 = vmatprep.subr.mxu0 0.0
  %527 = vmatpush1.msra.mxu0 0.0
  %528 = vmatprep.subr.mxu0 0.0
  %529 = vmatpush1.msra.mxu0 0.0
  %530 = vmatprep.subr.mxu0 0.0
  %531 = vmatpush1.msra.mxu0 0.0
  %532 = vmatprep.subr.mxu0 0.0
  %533 = vmatpush1.msra.mxu0 0.0
  %534 = vmatprep.subr.mxu0 0.0
  %535 = vmatpush1.msra.mxu0 0.0
  %536 = vmatprep.subr.mxu0 0.0
  %537 = vmatpush1.msra.mxu0 0.0
  %538 = vmatprep.mubr.f32.mxu0 0.0
  %539 = vmatmul.mubr.f32.gmra.mrb[0].mxu0 %v466
  %v540 = vpop.f32.mrb[0].mxu0
  %v541 = vadd.f32 %v458, %v540
  %v542 = vpop.f32.mrb[0].mxu0
  %543 = vmatprep.mubr.f32.mxu0 0.0
  %544 = vmatmul.mubr.f32.gmra.mrb[0].mxu0 %v469
  %v545 = vpop.f32.mrb[0].mxu0
  %v546 = vadd.f32 %v463, %v545
  %v547 = vpop.f32.mrb[0].mxu0
  %548 = vdwg.mxu0
  %v549 = vmax.f32 %v541, 0.0
  %v550 = vmax.f32 %v546, 0.0
  %v551 = vld [vmem:[%s11] sm:$0xf]
  %v552 = vld [vmem:[%s12] sm:$0xf]
  %554 = vset.pattern.permute.xlu0 0
  %555 = vperm.xlu0 %554, %v552
  %v556 = vpop.permute.xlu0 %555
  %v559 = vsel %vm163, %v551, 0
  %v562 = vsel %vm170, %v550, 0
  %564 = vmatprep.subr.mxu0 0.0
  %565 = vmatpush1.msra.mxu0 %v549
  %566 = vmatprep.subr.mxu0 0.0
  %567 = vmatpush1.msra.mxu0 %v562
  %568 = vmatprep.subr.mxu0 0.0
  %569 = vmatpush1.msra.mxu0 0.0
  %570 = vmatprep.subr.mxu0 0.0
  %571 = vmatpush1.msra.mxu0 0.0
  %572 = vmatprep.subr.mxu0 0.0
  %573 = vmatpush1.msra.mxu0 0.0
  %574 = vmatprep.subr.mxu0 0.0
  %575 = vmatpush1.msra.mxu0 0.0
  %576 = vmatprep.subr.mxu0 0.0
  %577 = vmatpush1.msra.mxu0 0.0
  %578 = vmatprep.subr.mxu0 0.0
  %579 = vmatpush1.msra.mxu0 0.0
  %580 = vmatprep.subr.mxu0 0.0
  %581 = vmatpush1.msra.mxu0 0.0
  %582 = vmatprep.subr.mxu0 0.0
  %583 = vmatpush1.msra.mxu0 0.0
  %584 = vmatprep.subr.mxu0 0.0
  %585 = vmatpush1.msra.mxu0 0.0
  %586 = vmatprep.subr.mxu0 0.0
  %587 = vmatpush1.msra.mxu0 0.0
  %588 = vmatprep.subr.mxu0 0.0
  %589 = vmatpush1.msra.mxu0 0.0
  %590 = vmatprep.subr.mxu0 0.0
  %591 = vmatpush1.msra.mxu0 0.0
  %592 = vmatprep.subr.mxu0 0.0
  %593 = vmatpush1.msra.mxu0 0.0
  %594 = vmatprep.subr.mxu0 0.0
  %595 = vmatpush1.msra.mxu0 0.0
  %596 = vmatprep.subr.mxu0 0.0
  %597 = vmatpush1.msra.mxu0 0.0
  %598 = vmatprep.subr.mxu0 0.0
  %599 = vmatpush1.msra.mxu0 0.0
  %600 = vmatprep.subr.mxu0 0.0
  %601 = vmatpush1.msra.mxu0 0.0
  %602 = vmatprep.subr.mxu0 0.0
  %603 = vmatpush1.msra.mxu0 0.0
  %604 = vmatprep.subr.mxu0 0.0
  %605 = vmatpush1.msra.mxu0 0.0
  %606 = vmatprep.subr.mxu0 0.0
  %607 = vmatpush1.msra.mxu0 0.0
  %608 = vmatprep.subr.mxu0 0.0
  %609 = vmatpush1.msra.mxu0 0.0
  %610 = vmatprep.subr.mxu0 0.0
  %611 = vmatpush1.msra.mxu0 0.0
  %612 = vmatprep.subr.mxu0 0.0
  %613 = vmatpush1.msra.mxu0 0.0
  %614 = vmatprep.subr.mxu0 0.0
  %615 = vmatpush1.msra.mxu0 0.0
  %616 = vmatprep.subr.mxu0 0.0
  %617 = vmatpush1.msra.mxu0 0.0
  %618 = vmatprep.subr.mxu0 0.0
  %619 = vmatpush1.msra.mxu0 0.0
  %620 = vmatprep.subr.mxu0 0.0
  %621 = vmatpush1.msra.mxu0 0.0
  %622 = vmatprep.subr.mxu0 0.0
  %623 = vmatpush1.msra.mxu0 0.0
  %624 = vmatprep.subr.mxu0 0.0
  %625 = vmatpush1.msra.mxu0 0.0
  %626 = vmatprep.subr.mxu0 0.0
  %627 = vmatpush1.msra.mxu0 0.0
  %628 = vmatprep.mubr.f32.mxu0 0.0
  %629 = vmatmul.mubr.f32.gmra.mrb[0].mxu0 %v559
  %v630 = vpop.f32.mrb[0].mxu0
  %v631 = vadd.f32 %v556, %v630
  %v632 = vpop.f32.mrb[0].mxu0
  %633 = vdwg.mxu0
  %634 = vst [vmem:[%s13] sm:$0xff] %v349
  %635 = vst [vmem:[%s13 + $0x8] sm:$0x3] %v350
  %636 = vst [vmem:[%s14] sm:$0xf] %v631
  // Predicated region
  $region54: #{autoencoder_forward.1} parent=0 // pred_check
    _
  $region55: #{autoencoder_forward.1} parent=0 // pred_check_branch
    %638 = sbr.rel (0) target = $region57
  $region56: #{autoencoder_forward.1} parent=0 // pred_region
    _
  $region57: #{autoencoder_forward.1} parent=0 // pred_fallthru
    _
  // Predicated region
  $region58: #{autoencoder_forward.1} parent=0 // pred_check
    _
  $region59: #{autoencoder_forward.1} parent=0 // pred_check_branch
    %640 = sbr.rel (0) target = $region61
  $region60: #{autoencoder_forward.1} parent=0 // pred_region
    _
  $region61: #{autoencoder_forward.1} parent=0 // pred_fallthru
    _
  // Predicated region
  $region62: #{autoencoder_forward.1} parent=0 // pred_check
    _
  $region63: #{autoencoder_forward.1} parent=0 // pred_check_branch
    %642 = sbr.rel (0) target = $region65
  $region64: #{autoencoder_forward.1} parent=0 // pred_region
    _
  $region65: #{autoencoder_forward.1} parent=0 // pred_fallthru
    _
  // Predicated region
  $region66: #{autoencoder_forward.1} parent=0 // pred_check
    _
  $region67: #{autoencoder_forward.1} parent=0 // pred_check_branch
    %644 = sbr.rel (0) target = $region69
  $region68: #{autoencoder_forward.1} parent=0 // pred_region
    _
  $region69: #{autoencoder_forward.1} parent=0 // pred_fallthru
    _

</llo_original>
